<compile_context>
chip_gen: v5e
topology: v5e:2x2
jax: 0.10.0
libtpu: 0.0.40
codegen_flags: <defaults>
</compile_context>

<pallas_src>
import jax
import jax.numpy as jnp
from jax.experimental import pallas as pl
from jax.experimental.pallas import tpu as pltpu  # noqa: F401  (used by the production TODO path)


def _round_up(v, m):
    return ((v + m - 1) // m) * m


def _linear_subspace_kernel(x_ref, alpha_ref, w_ref, o_ref):
    """One invocation, one MXU GEMM.

    xa[b, a*Din + i]  = alpha[b, a] * x[b, i]
    xa[b, A*Din + a]  = alpha[b, a]          (picks up the bias rows of w_aug)
    out               = xa @ w_aug
    """
    x = x_ref[...]                       # [B, Din]
    alpha = alpha_ref[...]               # [B, A]
    b_rows, d_in = x_ref.shape
    n_anchors = alpha_ref.shape[-1]      # static
    k_padded = w_ref.shape[0]            # static (multiple of 8, padded offline)

    pieces = [alpha[:, a:a + 1] * x for a in range(n_anchors)]   # A x [B, Din]
    pieces.append(alpha)                                          # bias lanes
    pad = k_padded - (n_anchors * d_in + n_anchors)
    if pad:                                                       # static
        pieces.append(jnp.zeros((b_rows, pad), dtype=x.dtype))
    xa = jnp.concatenate(pieces, axis=-1)                         # [B, Kp]

    o_ref[...] = jnp.dot(
        xa, w_ref[...], preferred_element_type=jnp.float32
    ).astype(o_ref.dtype)


def prepare_linear_subspace_params(weights, biases):
    """One-time parameter prep (keep OUT of the per-step hot path).

    weights: [A, Din, Dout]  (already [in, out]; transpose PyTorch's [out, in])
    biases:  [A, Dout]
    returns  w_aug: [round_up(A*Din + A, 8), Dout]
             rows [a*Din : (a+1)*Din) = W_a, row A*Din + a = bias_a, rest zeros.
    """
    n_anchors, d_in, d_out = weights.shape
    w_flat = weights.reshape(n_anchors * d_in, d_out)
    w_aug = jnp.concatenate([w_flat, biases], axis=0)     # [A*Din + A, Dout]
    k = n_anchors * d_in + n_anchors
    kp = _round_up(k, 8)
    if kp != k:
        w_aug = jnp.pad(w_aug, ((0, kp - k), (0, 0)))     # exact: zero rows
    return w_aug


@jax.jit
def linear_subspace_forward(x, alpha, w_aug):
    """
    x:     [B, Din]
    alpha: [B, A]
    w_aug: [Kp, Dout]  from prepare_linear_subspace_params (static params)
    returns [B, Dout]
    """
    b, _ = x.shape
    kp, d_out = w_aug.shape

    flops = 2 * b * kp * d_out
    bytes_accessed = 4 * (x.size + alpha.size + w_aug.size + b * d_out)

    return pl.pallas_call(
        _linear_subspace_kernel,
        out_shape=jax.ShapeDtypeStruct((b, d_out), x.dtype),
        cost_estimate=pl.CostEstimate(
            flops=flops, transcendentals=0, bytes_accessed=bytes_accessed
        ),
    )(x, alpha, w_aug)


def linear_subspace_reference(x, alpha, weights, biases):
    """Pure-JAX reference matching the PyTorch forward exactly."""
    xs = jnp.einsum("bi,aio->boa", x, weights) + biases.T[None, :, :]
    return (xs * alpha[:, None, :]).sum(-1)


if __name__ == "__main__":
    # Module hyperparameters (synthetic, small).
    n_anchors = 3
    in_channels = 32
    out_channels = 16
    batch = 8

    key = jax.random.PRNGKey(0)
    k_x, k_alpha, k_w, k_b = jax.random.split(key, 4)

    # Deterministic "nn.Linear"-style init: U(-1/sqrt(in), 1/sqrt(in)).
    bound = 1.0 / (in_channels ** 0.5)
    # PyTorch weight layout is [out, in]; transpose once to [in, out].
    weights_oi = jax.random.uniform(
        k_w, (n_anchors, out_channels, in_channels),
        minval=-bound, maxval=bound, dtype=jnp.float32)
    weights = jnp.transpose(weights_oi, (0, 2, 1))          # [A, Din, Dout]
    biases = jax.random.uniform(
        k_b, (n_anchors, out_channels),
        minval=-bound, maxval=bound, dtype=jnp.float32)     # [A, Dout]

    x = jax.random.normal(k_x, (batch, in_channels), dtype=jnp.float32)
    # Mixing coefficients (simplex-like, matching Dirichlet-style usage).
    alpha_logits = jax.random.normal(k_alpha, (batch, n_anchors), dtype=jnp.float32)
    alpha = jax.nn.softmax(alpha_logits, axis=-1)

    # One-time parameter prep, outside the hot path.
    w_aug = jax.block_until_ready(prepare_linear_subspace_params(weights, biases))

    out = linear_subspace_forward(x, alpha, w_aug)
    out = jax.block_until_ready(out)

    ref = linear_subspace_reference(x, alpha, weights, biases)
    assert out.shape == (batch, out_channels)
    assert jnp.allclose(out, ref, atol=1e-5, rtol=1e-5), "mismatch vs reference"

    print("KERNEL_OK")
</pallas_src>

<mosaic_0001>
module attributes {stable_mosaic.version = 11 : i64} {
  func.func @_linear_subspace_kernel(%arg0: memref<8x32xf32, #tpu.memory_space<vmem>>, %arg1: memref<8x3xf32, #tpu.memory_space<vmem>>, %arg2: memref<104x16xf32, #tpu.memory_space<vmem>>, %arg3: memref<8x16xf32, #tpu.memory_space<vmem>>) attributes {dimension_semantics = [], scalar_prefetch = 0 : i64, scratch_operands = 0 : i64, tpu.core_type = #tpu.core_type<tc>} {
    %c0 = arith.constant 0 : index
    %c0_0 = arith.constant 0 : index
    %0 = vector.load %arg0[%c0, %c0_0] : memref<8x32xf32, #tpu.memory_space<vmem>>, vector<8x32xf32>
    %c0_1 = arith.constant 0 : index
    %c0_2 = arith.constant 0 : index
    %1 = vector.load %arg1[%c0_1, %c0_2] : memref<8x3xf32, #tpu.memory_space<vmem>>, vector<8x3xf32>
    %2 = vector.extract_strided_slice %1 {offsets = [0, 0], sizes = [8, 1], strides = [1, 1]} : vector<8x3xf32> to vector<8x1xf32>
    %3 = vector.broadcast %2 : vector<8x1xf32> to vector<8x32xf32>
    %4 = arith.mulf %3, %0 : vector<8x32xf32>
    %5 = vector.extract_strided_slice %1 {offsets = [0, 1], sizes = [8, 1], strides = [1, 1]} : vector<8x3xf32> to vector<8x1xf32>
    %6 = vector.broadcast %5 : vector<8x1xf32> to vector<8x32xf32>
    %7 = arith.mulf %6, %0 : vector<8x32xf32>
    %8 = vector.extract_strided_slice %1 {offsets = [0, 2], sizes = [8, 1], strides = [1, 1]} : vector<8x3xf32> to vector<8x1xf32>
    %9 = vector.broadcast %8 : vector<8x1xf32> to vector<8x32xf32>
    %10 = arith.mulf %9, %0 : vector<8x32xf32>
    %cst = arith.constant 0.000000e+00 : f32
    %11 = vector.broadcast %cst : f32 to vector<8x5xf32>
    %12 = tpu.concatenate %4, %7, %10, %1, %11 in 1 : vector<8x32xf32>, vector<8x32xf32>, vector<8x32xf32>, vector<8x3xf32>, vector<8x5xf32> -> vector<8x104xf32>
    %c0_3 = arith.constant 0 : index
    %c0_4 = arith.constant 0 : index
    %13 = vector.load %arg2[%c0_3, %c0_4] : memref<104x16xf32, #tpu.memory_space<vmem>>, vector<104x16xf32>
    %cst_5 = arith.constant dense<0.000000e+00> : vector<8x16xf32>
    %14 = tpu.matmul %12, %13, %cst_5 {dimension_numbers = #tpu.dot_dimension_numbers<[1], [0], [0], [1], [0, 0, 1, 1], [], []>} : vector<8x104xf32>, vector<104x16xf32>, vector<8x16xf32> -> vector<8x16xf32>
    %c0_6 = arith.constant 0 : index
    %c0_7 = arith.constant 0 : index
    %15 = vector.load %arg3[%c0_6, %c0_7] : memref<8x16xf32, #tpu.memory_space<vmem>>, vector<8x16xf32>
    tpu.vector_store %arg3[%c0_6, %c0_7], %14 {strides = array<i32>} : memref<8x16xf32, #tpu.memory_space<vmem>>, vector<8x16xf32>,
    return
  }
}

</mosaic_0001>

<llo_original>
// kernel: linear_subspace_forward.1
$region0: #{linear_subspace_forward.1}
  #allocation0 [shape = 'u32[]', space=smem, size = 0x4, offset = 0x4, fixed_abs, tag = 'smem constant byte address 0x4 - core index']
  #allocation1 [shape = 'u32[72,128]{1,0:T(1,128)}', space=vmem, size = 0x9000, scoped, tag = 'internal scratch']
  %s0 = inlined_call_operand.vmem [shape: f32[8,32], index: 0, kind: input, shape index: {}]
  %s1 = inlined_call_operand.vmem [shape: f32[8,3], index: 1, kind: input, shape index: {}]
  %s2 = inlined_call_operand.vmem [shape: f32[104,16], index: 2, kind: input, shape index: {}]
  %s3 = inlined_call_operand.hbm [shape: f32[8,16], index: 3, kind: output, shape index: {}]
  %s4 = sld [smem:[#allocation0]]
  $region22: #{linear_subspace_forward.1} parent=0
    _
  %s6 = ssub.s32 1, %s4
  %s7 = scalar_select 0, %s6, %s4
  $region1: #{linear_subspace_forward.1} parent=0
    #allocation2 [shape = 'u8[4096]{0}', space=vmem, size = 0x1000, scoped, tag = 'output window, operand 0, single buffered']
    #allocation3 [shape = 's32[1]{0}', space=sflag, size = 0x4, scoped, tag = 'scoped memory for linear_subspace_forward.1']
    %8 = vsyncpa [#allocation3], 0
    // Predicated region
    $region2: #{linear_subspace_forward.1} parent=1 // pred_check
      _
    $region3: #{linear_subspace_forward.1} parent=1 // pred_check_branch
      %10 = sbr.rel (0) target = $region5
    $region4: #{linear_subspace_forward.1} parent=1 // pred_region
      _
    $region5: #{linear_subspace_forward.1} parent=1 // pred_fallthru
      _
    // Predicated region
    $region6: #{linear_subspace_forward.1} parent=1 // pred_check
      _
    $region7: #{linear_subspace_forward.1} parent=1 // pred_check_branch
      %12 = sbr.rel (0) target = $region9
    $region8: #{linear_subspace_forward.1} parent=1 // pred_region
      _
    $region9: #{linear_subspace_forward.1} parent=1 // pred_fallthru
      _
    // Predicated region
    $region10: #{linear_subspace_forward.1} parent=1 // pred_check
      _
    $region11: #{linear_subspace_forward.1} parent=1 // pred_check_branch
      %14 = sbr.rel (0) target = $region13
    $region12: #{linear_subspace_forward.1} parent=1 // pred_region
      _
    $region13: #{linear_subspace_forward.1} parent=1 // pred_fallthru
      _
    %v15 = vld [vmem:[%s0] sm:$0xff]
    %v16 = vld [vmem:[%s1] sm:$0xff]
    %18 = vset.pattern.permute.xlu0 0
    %19 = vperm.xlu0 %18, %v16
    %v20 = vpop.permute.xlu0 %19
    %v22 = vmul.f32 %v20, %v15
    %23 = vset.pattern.permute.xlu0 1
    %24 = vperm.xlu0 %23, %v16
    %v25 = vpop.permute.xlu0 %24
    %v27 = vmul.f32 %v25, %v15
    %28 = vset.pattern.permute.xlu0 2
    %29 = vperm.xlu0 %28, %v16
    %v30 = vpop.permute.xlu0 %29
    %v32 = vmul.f32 %v30, %v15
    %34 = vrot.lane.b32.xlu0 %v27, 32
    %v35 = vpop.permute.xlu0 %34
    %38 = vrot.lane.b32.xlu0 %v32, 64
    %v39 = vpop.permute.xlu0 %38
    %41 = vrot.lane.b32.xlu0 %v16, 96
    %v42 = vpop.permute.xlu0 %41
    %vm44 = vcmask 261120
    %v45 = vsel %vm44, %v22, %v35
    %vm46 = vcmask 523264
    %v47 = vsel %vm46, %v45, %v39
    %vm48 = vcmask 785408
    %v49 = vsel %vm48, %v47, %v42
    %vm50 = vcmask 809984
    %v51 = vsel %vm50, %v49, 0.0
    %v52 = vld [vmem:[%s2] sm:$0xff]
    %v53 = vld [vmem:[%s2 + $0x8] sm:$0xff]
    %v54 = vld [vmem:[%s2 + $0x10] sm:$0xff]
    %v55 = vld [vmem:[%s2 + $0x18] sm:$0xff]
    %v56 = vld [vmem:[%s2 + $0x20] sm:$0xff]
    %v57 = vld [vmem:[%s2 + $0x28] sm:$0xff]
    %v58 = vld [vmem:[%s2 + $0x30] sm:$0xff]
    %v59 = vld [vmem:[%s2 + $0x38] sm:$0xff]
    %v60 = vld [vmem:[%s2 + $0x40] sm:$0xff]
    %v61 = vld [vmem:[%s2 + $0x48] sm:$0xff]
    %v62 = vld [vmem:[%s2 + $0x50] sm:$0xff]
    %v63 = vld [vmem:[%s2 + $0x58] sm:$0xff]
    %v64 = vld [vmem:[%s2 + $0x60] sm:$0xff]
    %vm65 = vcmask 850944
    %v67 = vsel %vm65, %v51, 0
    %69 = vmatpush.msra.mxu0 0.0
    %70 = vmatpush.msra.mxu0 0.0
    %71 = vmatpush.msra.mxu0 0.0
    %72 = vmatpush.msra.mxu0 %v64
    %73 = vmatpush.msra.mxu0 %v63
    %74 = vmatpush.msra.mxu0 %v62
    %75 = vmatpush.msra.mxu0 %v61
    %76 = vmatpush.msra.mxu0 %v60
    %77 = vmatpush.msra.mxu0 %v59
    %78 = vmatpush.msra.mxu0 %v58
    %79 = vmatpush.msra.mxu0 %v57
    %80 = vmatpush.msra.mxu0 %v56
    %81 = vmatpush.msra.mxu0 %v55
    %82 = vmatpush.msra.mxu0 %v54
    %83 = vmatpush.msra.mxu0 %v53
    %84 = vmatpush.msra.mxu0 %v52
    %85 = vmatmul.f32.gmra.mxu0 %v67
    %v86 = vpop.f32.mrf.mxu0
    %v87 = vadd.f32 0.0, %v86
    %88 = vdwg.mxu0
    %vm89 = vcmask 130048
    %90 = vst.msk [vmem:[#allocation2] sm:$0xff] %vm89, %v87
    // Predicated region
    $region14: #{linear_subspace_forward.1} parent=1 // pred_check
      _
    $region15: #{linear_subspace_forward.1} parent=1 // pred_check_branch
      %92 = sbr.rel (0) target = $region17
    $region16: #{linear_subspace_forward.1} parent=1 // pred_region
      %94 = vsyncadd [#allocation3], 0
      %s96 = sshll.u32 [#allocation2], 4
      %s97 = int_to_ptr.vmem [resolvable:$true] %s96
      %s98 = sshll.u32 %s3, 4
      %s99 = int_to_ptr.hbm [resolvable:$true] %s98
      %101 = dma.vmem_to_hbm [thread:$0]  %s97, 128, %s99, [#allocation3]
    $region17: #{linear_subspace_forward.1} parent=1 // pred_fallthru
      _
    // Predicated region
    $region18: #{linear_subspace_forward.1} parent=1 // pred_check
      _
    $region19: #{linear_subspace_forward.1} parent=1 // pred_check_branch
      %103 = sbr.rel (0) target = $region21
    $region20: #{linear_subspace_forward.1} parent=1 // pred_region
      %105 = dma.done [#allocation3], 128
    $region21: #{linear_subspace_forward.1} parent=1 // pred_fallthru
      _
    %106 = vsyncpa [#allocation3], 1

</llo_original>
